<compile_context>
chip_gen: v7x
topology: tpu7x:2x2x1
jax: 0.10.0
libtpu: 0.0.40
codegen_flags: <defaults>
</compile_context>

<pallas_src>
import jax
import jax.numpy as jnp
import numpy as np
from jax.experimental import pallas as pl
from jax.experimental.pallas import tpu as pltpu

VMEM_LIMIT = 48 * 1024 * 1024          # safe on v5e/v6e (128 MiB) and v7x (64 MiB)
VMEM_DATA_BUDGET = 44 * 1024 * 1024    # headroom for compiler scratch


def _round_up(x, m):
    return ((x + m - 1) // m) * m


def _make_convblk_kernel(np_logical, np_padded, eps):
    inv_count = 1.0 / float(np_logical)
    needs_mask = np_padded != np_logical

    def kernel(p_ref, w_ref, b_ref, g_ref, beta_ref, o_ref):
        # Single im2col GEMM on the MXU (bf16 operands, f32 accumulation):
        #   (TO, Kc_pad) @ (Kc_pad, NP_pad) -> (TO, NP_pad)
        acc = jnp.dot(w_ref[...], p_ref[...],
                      preferred_element_type=jnp.float32)
        y = jnp.maximum(acc + b_ref[...], 0.0)                # bias + ReLU
        # Dropout(p=0) is the identity.
        if needs_mask:
            # Ignore lane-padding columns in the batch statistics.
            col = jax.lax.broadcasted_iota(jnp.int32, y.shape, 1)
            y = jnp.where(col < np_logical, y, 0.0)
        # BatchNorm2d (training mode, biased batch variance), one-pass stats
        # folded into a single (scale, shift) FMA.
        mean = jnp.sum(y, axis=1, keepdims=True) * inv_count
        sqmean = jnp.sum(y * y, axis=1, keepdims=True) * inv_count
        var = jnp.maximum(sqmean - mean * mean, 0.0)
        scale = g_ref[...] * jax.lax.rsqrt(var + eps)
        shift = beta_ref[...] - mean * scale
        o_ref[...] = y * scale + shift

    return kernel


def _pool4_kernel(a_ref, b_ref, c_ref, d_ref, o_ref):
    # Elementwise max of the four 2x2-window views == MaxPool2d(2, 2).
    o_ref[...] = jnp.maximum(jnp.maximum(a_ref[...], b_ref[...]),
                             jnp.maximum(c_ref[...], d_ref[...]))


def _pick_o_tile(o, kc_pad, np_pad):
    """Largest O-tile (multiple of 8, <=128) that fits the VMEM budget and,
    when possible, leaves >=2 grid steps so both v7x TensorCores get work."""
    def vmem_need(t):
        return (kc_pad * np_pad * 2           # resident patches (bf16, 1 buffer)
                + 2 * t * kc_pad * 2          # weight tile (bf16, double buffered)
                + 2 * 3 * t * 4               # bias / gamma / beta
                + 2 * t * np_pad * 4)         # f32 output tile (double buffered)
    divs = [d for d in range(8, 129, 8) if o % d == 0]
    if not divs:
        return o
    fitting = [d for d in divs if vmem_need(d) <= VMEM_DATA_BUDGET] or [min(divs)]
    two_core = [d for d in fitting if o // d >= 2]
    return max(two_core) if two_core else max(fitting)


def green_forward(x, w, b, gamma, beta, *, stride=1, padding=1,
                  eps=1e-5, drop_p=0.0):
    """Pallas forward of `green`: returns (output_main, output_side)."""
    if drop_p != 0.0:
        # TODO(synk): dropout with p>0 (pos in (4,5)) not implemented.
        raise NotImplementedError("drop_out=True is not supported")

    N, C, H, W = x.shape
    O, _, KH, KW = w.shape
    OH = (H + 2 * padding - KH) // stride + 1
    OW = (W + 2 * padding - KW) // stride + 1
    NP = N * OH * OW
    Kc = C * KH * KW
    f32, bf16 = jnp.float32, jnp.bfloat16

    NP_pad = _round_up(NP, 128)    # lane-dense output slabs
    Kc_pad = _round_up(Kc, 16)     # bf16 sublane packing

    x_pad = jnp.pad(x.astype(f32),
                    ((0, 0), (0, 0), (padding, padding), (padding, padding)))

    # im2col (wrapper-side layout plumbing): patches[(c,kh,kw), (n,oh,ow)].
    # TODO(synk): for large N*OH*OW, tile NP (or build the patches in-kernel
    # from a VMEM-resident x tile) instead of keeping the expanded patch
    # matrix fully resident; see VMEM budget in _pick_o_tile.
    cols = []
    for kh in range(KH):
        for kw in range(KW):
            win = jax.lax.slice(
                x_pad, (0, 0, kh, kw),
                (N, C, kh + (OH - 1) * stride + 1, kw + (OW - 1) * stride + 1),
                (1, 1, stride, stride))                       # (N, C, OH, OW)
            cols.append(win)
    patches = jnp.stack(cols, axis=2)                         # (N, C, KH*KW, OH, OW)
    patches = patches.transpose(1, 2, 0, 3, 4).reshape(Kc, NP)
    patches = jnp.pad(patches, ((0, Kc_pad - Kc), (0, NP_pad - NP)))
    patches = patches.astype(bf16)                            # bf16 MXU path

    w_flat = jnp.pad(w.astype(f32).reshape(O, Kc),
                     ((0, 0), (0, Kc_pad - Kc))).astype(bf16)
    b2 = b.reshape(O, 1).astype(f32)
    g2 = gamma.reshape(O, 1).astype(f32)
    be2 = beta.reshape(O, 1).astype(f32)

    TO = _pick_o_tile(O, Kc_pad, NP_pad)
    kernel = _make_convblk_kernel(NP, NP_pad, eps)

    def gemm_call(single_buffer_patches):
        if single_buffer_patches:
            # Constant index_map -> the block never changes; one buffer suffices.
            patches_spec = pl.BlockSpec((Kc_pad, NP_pad), lambda i: (0, 0),
                                        pipeline_mode=pl.Buffered(1))
        else:
            patches_spec = pl.BlockSpec((Kc_pad, NP_pad), lambda i: (0, 0))
        return pl.pallas_call(
            kernel,
            out_shape=jax.ShapeDtypeStruct((O, NP_pad), f32),
            grid_spec=pltpu.PrefetchScalarGridSpec(
                num_scalar_prefetch=0,
                grid=(O // TO,),
                in_specs=[
                    patches_spec,                                  # resident patches
                    pl.BlockSpec((TO, Kc_pad), lambda i: (i, 0)),  # weight tile
                    pl.BlockSpec((TO, 1), lambda i: (i, 0)),       # bias
                    pl.BlockSpec((TO, 1), lambda i: (i, 0)),       # gamma
                    pl.BlockSpec((TO, 1), lambda i: (i, 0)),       # beta
                ],
                out_specs=pl.BlockSpec((TO, NP_pad), lambda i: (i, 0)),
            ),
            compiler_params=pltpu.CompilerParams(
                dimension_semantics=("parallel",),
                vmem_limit_bytes=VMEM_LIMIT),
        )(patches, w_flat, b2, g2, be2)

    try:
        side_flat = gemm_call(True)
    except Exception:
        # Fallback for Pallas versions without single-buffer pipeline_mode.
        side_flat = gemm_call(False)

    # (O, NP_pad) -> (N, O, OH, OW)
    side = side_flat[:, :NP].reshape(O, N, OH, OW).transpose(1, 0, 2, 3)

    # --- MaxPool2d(2, 2) of the zero-padded-to-even side output -------------
    side_p = jnp.pad(side, ((0, 0), (0, 0), (0, OH % 2), (0, OW % 2)))
    PH, PW = (OH + OH % 2) // 2, (OW + OW % 2) // 2

    # TODO(synk): the four strided window views are still materialized by XLA;
    # fusing the 2x2 max into the GEMM epilogue (lane compaction) would remove
    # this extra HBM round trip.
    views = (side_p[:, :, 0::2, 0::2], side_p[:, :, 0::2, 1::2],
             side_p[:, :, 1::2, 0::2], side_p[:, :, 1::2, 1::2])

    flat = N * O * PH * PW
    flat_pad = _round_up(flat, 8 * 128)
    rows = flat_pad // 128

    def as_rows(v):
        v1 = v.reshape(flat)
        if flat_pad != flat:
            v1 = jnp.pad(v1, (0, flat_pad - flat))
        return v1.reshape(rows, 128)

    # Largest row tile (multiple of 8, <=512) dividing `rows`: every block is
    # (TR, 128)-lane-dense, pipelined, and tiny relative to VMEM.
    TR = 8
    for cand in range(8, min(rows, 512) + 1, 8):
        if rows % cand == 0:
            TR = cand

    main_rows = pl.pallas_call(
        _pool4_kernel,
        out_shape=jax.ShapeDtypeStruct((rows, 128), f32),
        grid_spec=pltpu.PrefetchScalarGridSpec(
            num_scalar_prefetch=0,
            grid=(rows // TR,),
            in_specs=[pl.BlockSpec((TR, 128), lambda i: (i, 0))
                      for _ in range(4)],
            out_specs=pl.BlockSpec((TR, 128), lambda i: (i, 0)),
        ),
        compiler_params=pltpu.CompilerParams(
            dimension_semantics=("parallel",),
            vmem_limit_bytes=VMEM_LIMIT),
    )(*map(as_rows, views))

    main = main_rows.reshape(flat_pad)[:flat].reshape(N, O, PH, PW)
    return main, side


def green_reference(x, w, b, gamma, beta, *, stride=1, padding=1, eps=1e-5):
    # Mirror the kernel's intentional bf16 rounding of the GEMM operands so the
    # comparison checks kernel structure rather than bf16 quantization noise.
    xb = x.astype(jnp.bfloat16).astype(jnp.float32)
    wb = w.astype(jnp.bfloat16).astype(jnp.float32)
    conv = jax.lax.conv_general_dilated(
        xb, wb, window_strides=(stride, stride),
        padding=((padding, padding), (padding, padding)),
        dimension_numbers=("NCHW", "OIHW", "NCHW"),
        precision=jax.lax.Precision.HIGHEST)
    conv = conv + b[None, :, None, None]
    y = jnp.maximum(conv, 0.0)
    mean = jnp.mean(y, axis=(0, 2, 3), keepdims=True)
    var = jnp.mean((y - mean) ** 2, axis=(0, 2, 3), keepdims=True)
    side = ((y - mean) / jnp.sqrt(var + eps) * gamma[None, :, None, None]
            + beta[None, :, None, None])
    _, _, OH, OW = side.shape
    side_pad = jnp.pad(side, ((0, 0), (0, 0), (0, OH % 2), (0, OW % 2)))
    main = jax.lax.reduce_window(side_pad, -jnp.inf, jax.lax.max,
                                 (1, 1, 2, 2), (1, 1, 2, 2), "VALID")
    return main, side


if __name__ == "__main__":
    # green(channels, pos=0): conv_blk(in=1, out=32, k=3, s=1, p=1,
    # drop_out=False) followed by MaxPool2d(2, 2).
    N, C, O, H, W, K = 2, 1, 32, 16, 16, 3
    stride, padding = 1, 1

    key = jax.random.PRNGKey(0)
    kx, kw, kb, kg, kbe = jax.random.split(key, 5)
    x = jax.random.normal(kx, (N, C, H, W), jnp.float32)
    w = 0.1 * jax.random.normal(kw, (O, C, K, K), jnp.float32)
    b = 0.1 * jax.random.normal(kb, (O,), jnp.float32)
    gamma = 1.0 + 0.1 * jax.random.normal(kg, (O,), jnp.float32)
    beta = 0.1 * jax.random.normal(kbe, (O,), jnp.float32)

    main_out, side_out = green_forward(x, w, b, gamma, beta,
                                       stride=stride, padding=padding)
    main_out = jax.block_until_ready(main_out)
    side_out = jax.block_until_ready(side_out)

    main_ref, side_ref = green_reference(x, w, b, gamma, beta,
                                         stride=stride, padding=padding)
    main_ref = jax.block_until_ready(main_ref)
    side_ref = jax.block_until_ready(side_ref)

    assert side_out.shape == (N, O, H, W)
    assert main_out.shape == (N, O, H // 2, W // 2)
    assert np.allclose(np.asarray(side_out), np.asarray(side_ref),
                       atol=2e-3, rtol=2e-3), "output_side mismatch"
    assert np.allclose(np.asarray(main_out), np.asarray(main_ref),
                       atol=2e-3, rtol=2e-3), "output_main mismatch"
    print("KERNEL_OK")
</pallas_src>

<mosaic_0001>
module attributes {stable_mosaic.version = 11 : i64} {
  func.func @kernel(%arg0: i32, %arg1: memref<16x512xbf16, #tpu.memory_space<vmem>>, %arg2: memref<16x16xbf16, #tpu.memory_space<vmem>>, %arg3: memref<16x1xf32, #tpu.memory_space<vmem>>, %arg4: memref<16x1xf32, #tpu.memory_space<vmem>>, %arg5: memref<16x1xf32, #tpu.memory_space<vmem>>, %arg6: memref<16x512xf32, #tpu.memory_space<vmem>>) attributes {dimension_semantics = [#tpu.dimension_semantics<parallel>], iteration_bounds = array<i64: 2>, scalar_prefetch = 0 : i64, scratch_operands = 0 : i64, tpu.core_type = #tpu.core_type<tc>, window_params = [{pipeline_mode = #tpu.pipeline_mode<synchronous>, transform_indices = @transform_0, window_bounds = array<i64: 16, 512>}, {transform_indices = @transform_1, window_bounds = array<i64: 16, 16>}, {transform_indices = @transform_2, window_bounds = array<i64: 16, 1>}, {transform_indices = @transform_3, window_bounds = array<i64: 16, 1>}, {transform_indices = @transform_4, window_bounds = array<i64: 16, 1>}, {transform_indices = @transform_5, window_bounds = array<i64: 16, 512>}]} {
    %c0 = arith.constant 0 : index
    %c0_0 = arith.constant 0 : index
    %0 = vector.load %arg2[%c0, %c0_0] : memref<16x16xbf16, #tpu.memory_space<vmem>>, vector<16x16xbf16>
    %c0_1 = arith.constant 0 : index
    %c0_2 = arith.constant 0 : index
    %1 = vector.load %arg1[%c0_1, %c0_2] : memref<16x512xbf16, #tpu.memory_space<vmem>>, vector<16x512xbf16>
    %cst = arith.constant dense<0.000000e+00> : vector<16x512xf32>
    %2 = tpu.matmul %0, %1, %cst {dimension_numbers = #tpu.dot_dimension_numbers<[1], [0], [0], [1], [0, 0, 1, 1], [], []>} : vector<16x16xbf16>, vector<16x512xbf16>, vector<16x512xf32> -> vector<16x512xf32>
    %c0_3 = arith.constant 0 : index
    %c0_4 = arith.constant 0 : index
    %3 = vector.load %arg3[%c0_3, %c0_4] : memref<16x1xf32, #tpu.memory_space<vmem>>, vector<16x1xf32>
    %4 = vector.broadcast %3 : vector<16x1xf32> to vector<16x512xf32>
    %5 = arith.addf %2, %4 : vector<16x512xf32>
    %cst_5 = arith.constant 0.000000e+00 : f32
    %6 = vector.broadcast %cst_5 : f32 to vector<16x512xf32>
    %7 = arith.maximumf %5, %6 : vector<16x512xf32>
    %cst_6 = arith.constant dense<0.000000e+00> : vector<16xf32>
    %8 = vector.multi_reduction <add>, %7, %cst_6 [1] : vector<16x512xf32> to vector<16xf32>
    %9 = vector.shape_cast %8 : vector<16xf32> to vector<16x1xf32>
    %cst_7 = arith.constant 0.001953125 : f32
    %10 = vector.broadcast %cst_7 : f32 to vector<16x1xf32>
    %11 = arith.mulf %9, %10 : vector<16x1xf32>
    %12 = arith.mulf %7, %7 : vector<16x512xf32>
    %cst_8 = arith.constant dense<0.000000e+00> : vector<16xf32>
    %13 = vector.multi_reduction <add>, %12, %cst_8 [1] : vector<16x512xf32> to vector<16xf32>
    %14 = vector.shape_cast %13 : vector<16xf32> to vector<16x1xf32>
    %cst_9 = arith.constant 0.001953125 : f32
    %15 = vector.broadcast %cst_9 : f32 to vector<16x1xf32>
    %16 = arith.mulf %14, %15 : vector<16x1xf32>
    %17 = arith.mulf %11, %11 : vector<16x1xf32>
    %18 = arith.subf %16, %17 : vector<16x1xf32>
    %cst_10 = arith.constant 0.000000e+00 : f32
    %19 = vector.broadcast %cst_10 : f32 to vector<16x1xf32>
    %20 = arith.maximumf %18, %19 : vector<16x1xf32>
    %c0_11 = arith.constant 0 : index
    %c0_12 = arith.constant 0 : index
    %21 = vector.load %arg4[%c0_11, %c0_12] : memref<16x1xf32, #tpu.memory_space<vmem>>, vector<16x1xf32>
    %cst_13 = arith.constant 9.99999974E-6 : f32
    %22 = vector.broadcast %cst_13 : f32 to vector<16x1xf32>
    %23 = arith.addf %20, %22 : vector<16x1xf32>
    %24 = math.rsqrt %23 : vector<16x1xf32>
    %25 = arith.mulf %21, %24 : vector<16x1xf32>
    %c0_14 = arith.constant 0 : index
    %c0_15 = arith.constant 0 : index
    %26 = vector.load %arg5[%c0_14, %c0_15] : memref<16x1xf32, #tpu.memory_space<vmem>>, vector<16x1xf32>
    %27 = arith.mulf %11, %25 : vector<16x1xf32>
    %28 = arith.subf %26, %27 : vector<16x1xf32>
    %29 = vector.broadcast %25 : vector<16x1xf32> to vector<16x512xf32>
    %30 = arith.mulf %7, %29 : vector<16x512xf32>
    %31 = vector.broadcast %28 : vector<16x1xf32> to vector<16x512xf32>
    %32 = arith.addf %30, %31 : vector<16x512xf32>
    %c0_16 = arith.constant 0 : index
    %c0_17 = arith.constant 0 : index
    %33 = vector.load %arg6[%c0_16, %c0_17] : memref<16x512xf32, #tpu.memory_space<vmem>>, vector<16x512xf32>
    tpu.vector_store %arg6[%c0_16, %c0_17], %32 {strides = array<i32>} : memref<16x512xf32, #tpu.memory_space<vmem>>, vector<16x512xf32>,
    return
  }
  func.func @transform_0(%arg0: i32) -> (i32, i32) {
    %c0_i32 = arith.constant 0 : i32
    %c0_i32_0 = arith.constant 0 : i32
    %c0_i32_1 = arith.constant 0 : i32
    return %c0_i32, %c0_i32_0 : i32, i32
  }
  func.func @transform_1(%arg0: i32) -> (i32, i32) {
    %c0_i32 = arith.constant 0 : i32
    %c0_i32_0 = arith.constant 0 : i32
    return %arg0, %c0_i32 : i32, i32
  }
  func.func @transform_2(%arg0: i32) -> (i32, i32) {
    %c0_i32 = arith.constant 0 : i32
    %c0_i32_0 = arith.constant 0 : i32
    return %arg0, %c0_i32 : i32, i32
  }
  func.func @transform_3(%arg0: i32) -> (i32, i32) {
    %c0_i32 = arith.constant 0 : i32
    %c0_i32_0 = arith.constant 0 : i32
    return %arg0, %c0_i32 : i32, i32
  }
  func.func @transform_4(%arg0: i32) -> (i32, i32) {
    %c0_i32 = arith.constant 0 : i32
    %c0_i32_0 = arith.constant 0 : i32
    return %arg0, %c0_i32 : i32, i32
  }
  func.func @transform_5(%arg0: i32) -> (i32, i32) {
    %c0_i32 = arith.constant 0 : i32
    %c0_i32_0 = arith.constant 0 : i32
    return %arg0, %c0_i32 : i32, i32
  }
}

module attributes {stable_mosaic.version = 11 : i64} {
  func.func @kernel(%arg0: i32, %arg1: memref<16x512xbf16, #tpu.memory_space<vmem>>, %arg2: memref<16x16xbf16, #tpu.memory_space<vmem>>, %arg3: memref<16x1xf32, #tpu.memory_space<vmem>>, %arg4: memref<16x1xf32, #tpu.memory_space<vmem>>, %arg5: memref<16x1xf32, #tpu.memory_space<vmem>>, %arg6: memref<16x512xf32, #tpu.memory_space<vmem>>) attributes {dimension_semantics = [#tpu.dimension_semantics<parallel>], iteration_bounds = array<i64: 2>, scalar_prefetch = 0 : i64, scratch_operands = 0 : i64, tpu.core_type = #tpu.core_type<tc>, window_params = [{pipeline_mode = #tpu.pipeline_mode<synchronous>, transform_indices = @transform_0, window_bounds = array<i64: 16, 512>}, {transform_indices = @transform_1, window_bounds = array<i64: 16, 16>}, {transform_indices = @transform_2, window_bounds = array<i64: 16, 1>}, {transform_indices = @transform_3, window_bounds = array<i64: 16, 1>}, {transform_indices = @transform_4, window_bounds = array<i64: 16, 1>}, {transform_indices = @transform_5, window_bounds = array<i64: 16, 512>}]} {
    %c0 = arith.constant 0 : index
    %c0_0 = arith.constant 0 : index
    %0 = vector.load %arg2[%c0, %c0_0] : memref<16x16xbf16, #tpu.memory_space<vmem>>, vector<16x16xbf16>
    %c0_1 = arith.constant 0 : index
    %c0_2 = arith.constant 0 : index
    %1 = vector.load %arg1[%c0_1, %c0_2] : memref<16x512xbf16, #tpu.memory_space<vmem>>, vector<16x512xbf16>
    %cst = arith.constant dense<0.000000e+00> : vector<16x512xf32>
    %2 = tpu.matmul %0, %1, %cst {dimension_numbers = #tpu.dot_dimension_numbers<[1], [0], [0], [1], [0, 0, 1, 1], [], []>} : vector<16x16xbf16>, vector<16x512xbf16>, vector<16x512xf32> -> vector<16x512xf32>
    %c0_3 = arith.constant 0 : index
    %c0_4 = arith.constant 0 : index
    %3 = vector.load %arg3[%c0_3, %c0_4] : memref<16x1xf32, #tpu.memory_space<vmem>>, vector<16x1xf32>
    %4 = vector.broadcast %3 : vector<16x1xf32> to vector<16x512xf32>
    %5 = arith.addf %2, %4 : vector<16x512xf32>
    %cst_5 = arith.constant 0.000000e+00 : f32
    %6 = vector.broadcast %cst_5 : f32 to vector<16x512xf32>
    %7 = arith.maximumf %5, %6 : vector<16x512xf32>
    %cst_6 = arith.constant dense<0.000000e+00> : vector<16xf32>
    %8 = vector.multi_reduction <add>, %7, %cst_6 [1] : vector<16x512xf32> to vector<16xf32>
    %9 = vector.shape_cast %8 : vector<16xf32> to vector<16x1xf32>
    %cst_7 = arith.constant 0.001953125 : f32
    %10 = vector.broadcast %cst_7 : f32 to vector<16x1xf32>
    %11 = arith.mulf %9, %10 : vector<16x1xf32>
    %12 = arith.mulf %7, %7 : vector<16x512xf32>
    %cst_8 = arith.constant dense<0.000000e+00> : vector<16xf32>
    %13 = vector.multi_reduction <add>, %12, %cst_8 [1] : vector<16x512xf32> to vector<16xf32>
    %14 = vector.shape_cast %13 : vector<16xf32> to vector<16x1xf32>
    %cst_9 = arith.constant 0.001953125 : f32
    %15 = vector.broadcast %cst_9 : f32 to vector<16x1xf32>
    %16 = arith.mulf %14, %15 : vector<16x1xf32>
    %17 = arith.mulf %11, %11 : vector<16x1xf32>
    %18 = arith.subf %16, %17 : vector<16x1xf32>
    %cst_10 = arith.constant 0.000000e+00 : f32
    %19 = vector.broadcast %cst_10 : f32 to vector<16x1xf32>
    %20 = arith.maximumf %18, %19 : vector<16x1xf32>
    %c0_11 = arith.constant 0 : index
    %c0_12 = arith.constant 0 : index
    %21 = vector.load %arg4[%c0_11, %c0_12] : memref<16x1xf32, #tpu.memory_space<vmem>>, vector<16x1xf32>
    %cst_13 = arith.constant 9.99999974E-6 : f32
    %22 = vector.broadcast %cst_13 : f32 to vector<16x1xf32>
    %23 = arith.addf %20, %22 : vector<16x1xf32>
    %24 = math.rsqrt %23 : vector<16x1xf32>
    %25 = arith.mulf %21, %24 : vector<16x1xf32>
    %c0_14 = arith.constant 0 : index
    %c0_15 = arith.constant 0 : index
    %26 = vector.load %arg5[%c0_14, %c0_15] : memref<16x1xf32, #tpu.memory_space<vmem>>, vector<16x1xf32>
    %27 = arith.mulf %11, %25 : vector<16x1xf32>
    %28 = arith.subf %26, %27 : vector<16x1xf32>
    %29 = vector.broadcast %25 : vector<16x1xf32> to vector<16x512xf32>
    %30 = arith.mulf %7, %29 : vector<16x512xf32>
    %31 = vector.broadcast %28 : vector<16x1xf32> to vector<16x512xf32>
    %32 = arith.addf %30, %31 : vector<16x512xf32>
    %c0_16 = arith.constant 0 : index
    %c0_17 = arith.constant 0 : index
    %33 = vector.load %arg6[%c0_16, %c0_17] : memref<16x512xf32, #tpu.memory_space<vmem>>, vector<16x512xf32>
    tpu.vector_store %arg6[%c0_16, %c0_17], %32 {strides = array<i32>} : memref<16x512xf32, #tpu.memory_space<vmem>>, vector<16x512xf32>,
    return
  }
  func.func @transform_0(%arg0: i32) -> (i32, i32) {
    %c0_i32 = arith.constant 0 : i32
    %c0_i32_0 = arith.constant 0 : i32
    %c0_i32_1 = arith.constant 0 : i32
    return %c0_i32, %c0_i32_0 : i32, i32
  }
  func.func @transform_1(%arg0: i32) -> (i32, i32) {
    %c0_i32 = arith.constant 0 : i32
    %c0_i32_0 = arith.constant 0 : i32
    return %arg0, %c0_i32 : i32, i32
  }
  func.func @transform_2(%arg0: i32) -> (i32, i32) {
    %c0_i32 = arith.constant 0 : i32
    %c0_i32_0 = arith.constant 0 : i32
    return %arg0, %c0_i32 : i32, i32
  }
  func.func @transform_3(%arg0: i32) -> (i32, i32) {
    %c0_i32 = arith.constant 0 : i32
    %c0_i32_0 = arith.constant 0 : i32
    return %arg0, %c0_i32 : i32, i32
  }
  func.func @transform_4(%arg0: i32) -> (i32, i32) {
    %c0_i32 = arith.constant 0 : i32
    %c0_i32_0 = arith.constant 0 : i32
    return %arg0, %c0_i32 : i32, i32
  }
  func.func @transform_5(%arg0: i32) -> (i32, i32) {
    %c0_i32 = arith.constant 0 : i32
    %c0_i32_0 = arith.constant 0 : i32
    return %arg0, %c0_i32 : i32, i32
  }
}

</mosaic_0001>

<llo_original>
// kernel: tpu_custom_call.1
$region0: #{tpu_custom_call.1}
  #allocation0 [shape = 'u32[]', space=smem, size = 0x4, offset = 0x4, fixed_abs, tag = 'smem constant byte address 0x4 - core index']
  #allocation1 [shape = 'u32[144,128]{1,0:T(1,128)}', space=vmem, size = 0x12000, scoped, tag = 'internal scratch']
  %s0 = inlined_call_operand.vmem [shape: bf16[16,512], index: 0, kind: input, shape index: {}]
  %s1 = inlined_call_operand.vmem [shape: bf16[32,16], index: 1, kind: input, shape index: {}]
  %s2 = inlined_call_operand.vmem [shape: f32[32,1], index: 2, kind: input, shape index: {}]
  %s3 = inlined_call_operand.vmem [shape: f32[32,1], index: 3, kind: input, shape index: {}]
  %s4 = inlined_call_operand.vmem [shape: f32[32,1], index: 4, kind: input, shape index: {}]
  %s5 = inlined_call_operand.hbm [shape: f32[32,512], index: 5, kind: output, shape index: {}]
  %s6 = sld [smem:[#allocation0]]
  $region53: #{tpu_custom_call.1} parent=0
    _
  %s8 = ssub.s32 1, %s6
  %s9 = scalar_select 0, %s8, %s6
  $region1: #{tpu_custom_call.1} parent=0
    #allocation2 [shape = 'u8[65536]{0}', space=vmem, size = 0x10000, scoped, tag = 'output window, operand 0']
    #allocation3 [shape = 's32[2]{0}', space=sflag, size = 0x8, scoped, tag = 'scoped memory for tpu_custom_call.1']
    %10 = vsyncpa [#allocation3], 0
    %s11 = scalar_lea.sflag [#allocation3], 1
    %12 = vsyncpa %s11, 0
    loop: start=0, step=1, limit=4
    $region2: #{tpu_custom_call.1} parent=1 // loop_pre_header
      _
    $region3: #{tpu_custom_call.1} parent=1 // loop_header
      %s14 = sphi 0, %s18
      %p15 = scmp.ge.s32.totalorder %s14, 4
      %s22 = sphi 0, %s22
      %s24 = sphi 0, %s22
      %s25 = sphi 0, %s24
      %s39 = sphi 0, %s25
      %s45 = sphi 0, %s47
      %s48 = sphi 0, %s45
      %s49 = sphi 0, %s48
      %s65 = sphi 0, %s49
      %s71 = sphi 0, %s73
      %s74 = sphi 0, %s71
      %s75 = sphi 0, %s74
      %s91 = sphi 0, %s75
      %s97 = sphi 0, %s99
      %s100 = sphi 0, %s97
      %s101 = sphi 0, %s100
      %s117 = sphi 0, %s101
      %s123 = sphi 0, %s125
      %s126 = sphi 0, %s123
      %s127 = sphi 0, %s126
      %s143 = sphi 0, %s127
      %s149 = sphi 0, %s151
      %s152 = sphi 0, %s149
      %s153 = sphi 0, %s152
      %s169 = sphi 0, %s153
    $region4: #{tpu_custom_call.1} parent=1 // loop_header_branch
      %17 = sbr.rel (%p15) target = $region8
    $region5: #{tpu_custom_call.1} parent=1 // loop_body
      %s19 = ssub.s32 %s14, 1
      %s20 = ssub.s32 %s14, 2
      %s21 = sadd.s32 %s14, 1
      %s23 = sadd.s32 %s22, 1
      %p26 = scmp.eq.s32.totalorder %s14, 1
      %p27 = scmp.ne.s32.totalorder %s22, %s24
      %p28 = scmp.eq.s32.totalorder %s14, 0
      %p29 = por %p27, %p28
      %p30 = scmp.ne.s32.totalorder %s22, %s24
      %p31 = scmp.eq.s32.totalorder %s19, 1
      %p32 = por %p30, %p31
      %p33 = scmp.ne.s32.totalorder %s24, %s25
      %p34 = scmp.eq.s32.totalorder %s19, 0
      %p35 = por %p33, %p34
      %p36 = scmp.ne.s32.totalorder %s24, %s25
      %p37 = scmp.eq.s32.totalorder %s20, 1
      %p38 = por %p36, %p37
      %p40 = scmp.ne.s32.totalorder %s25, %s39
      %p41 = scmp.eq.s32.totalorder %s20, 0
      %p42 = por %p40, %p41
      %s43 = ssub.s32 %s14, %s21
      %p44 = scmp.eq.s32.totalorder %s43, 0
      %s46 = sadd.s32 %s45, 1
      %s47 = scalar_select %p44, %s45, %s46
      %p50 = pneg %p44
      %p51 = scmp.eq.s32.totalorder %s14, 1
      %p52 = por %p50, %p51
      %p53 = scmp.ne.s32.totalorder %s45, %s48
      %p54 = scmp.eq.s32.totalorder %s14, 0
      %p55 = por %p53, %p54
      %p56 = scmp.ne.s32.totalorder %s45, %s48
      %p57 = scmp.eq.s32.totalorder %s19, 1
      %p58 = por %p56, %p57
      %p59 = scmp.ne.s32.totalorder %s48, %s49
      %p60 = scmp.eq.s32.totalorder %s19, 0
      %p61 = por %p59, %p60
      %p62 = scmp.ne.s32.totalorder %s48, %s49
      %p63 = scmp.eq.s32.totalorder %s20, 1
      %p64 = por %p62, %p63
      %p66 = scmp.ne.s32.totalorder %s49, %s65
      %p67 = scmp.eq.s32.totalorder %s20, 0
      %p68 = por %p66, %p67
      %s69 = ssub.s32 %s14, %s21
      %p70 = scmp.eq.s32.totalorder %s69, 0
      %s72 = sadd.s32 %s71, 1
      %s73 = scalar_select %p70, %s71, %s72
      %p76 = pneg %p70
      %p77 = scmp.eq.s32.totalorder %s14, 1
      %p78 = por %p76, %p77
      %p79 = scmp.ne.s32.totalorder %s71, %s74
      %p80 = scmp.eq.s32.totalorder %s14, 0
      %p81 = por %p79, %p80
      %p82 = scmp.ne.s32.totalorder %s71, %s74
      %p83 = scmp.eq.s32.totalorder %s19, 1
      %p84 = por %p82, %p83
      %p85 = scmp.ne.s32.totalorder %s74, %s75
      %p86 = scmp.eq.s32.totalorder %s19, 0
      %p87 = por %p85, %p86
      %p88 = scmp.ne.s32.totalorder %s74, %s75
      %p89 = scmp.eq.s32.totalorder %s20, 1
      %p90 = por %p88, %p89
      %p92 = scmp.ne.s32.totalorder %s75, %s91
      %p93 = scmp.eq.s32.totalorder %s20, 0
      %p94 = por %p92, %p93
      %s95 = ssub.s32 %s14, %s21
      %p96 = scmp.eq.s32.totalorder %s95, 0
      %s98 = sadd.s32 %s97, 1
      %s99 = scalar_select %p96, %s97, %s98
      %p102 = pneg %p96
      %p103 = scmp.eq.s32.totalorder %s14, 1
      %p104 = por %p102, %p103
      %p105 = scmp.ne.s32.totalorder %s97, %s100
      %p106 = scmp.eq.s32.totalorder %s14, 0
      %p107 = por %p105, %p106
      %p108 = scmp.ne.s32.totalorder %s97, %s100
      %p109 = scmp.eq.s32.totalorder %s19, 1
      %p110 = por %p108, %p109
      %p111 = scmp.ne.s32.totalorder %s100, %s101
      %p112 = scmp.eq.s32.totalorder %s19, 0
      %p113 = por %p111, %p112
      %p114 = scmp.ne.s32.totalorder %s100, %s101
      %p115 = scmp.eq.s32.totalorder %s20, 1
      %p116 = por %p114, %p115
      %p118 = scmp.ne.s32.totalorder %s101, %s117
      %p119 = scmp.eq.s32.totalorder %s20, 0
      %p120 = por %p118, %p119
      %s121 = ssub.s32 %s14, %s21
      %p122 = scmp.eq.s32.totalorder %s121, 0
      %s124 = sadd.s32 %s123, 1
      %s125 = scalar_select %p122, %s123, %s124
      %p128 = pneg %p122
      %p129 = scmp.eq.s32.totalorder %s14, 1
      %p130 = por %p128, %p129
      %p131 = scmp.ne.s32.totalorder %s123, %s126
      %p132 = scmp.eq.s32.totalorder %s14, 0
      %p133 = por %p131, %p132
      %p134 = scmp.ne.s32.totalorder %s123, %s126
      %p135 = scmp.eq.s32.totalorder %s19, 1
      %p136 = por %p134, %p135
      %p137 = scmp.ne.s32.totalorder %s126, %s127
      %p138 = scmp.eq.s32.totalorder %s19, 0
      %p139 = por %p137, %p138
      %p140 = scmp.ne.s32.totalorder %s126, %s127
      %p141 = scmp.eq.s32.totalorder %s20, 1
      %p142 = por %p140, %p141
      %p144 = scmp.ne.s32.totalorder %s127, %s143
      %p145 = scmp.eq.s32.totalorder %s20, 0
      %p146 = por %p144, %p145
      %s147 = ssub.s32 %s14, %s21
      %p148 = scmp.eq.s32.totalorder %s147, 0
      %s150 = sadd.s32 %s149, 1
      %s151 = scalar_select %p148, %s149, %s150
      %p154 = pneg %p148
      %p155 = scmp.eq.s32.totalorder %s14, 1
      %p156 = por %p154, %p155
      %p157 = scmp.ne.s32.totalorder %s149, %s152
      %p158 = scmp.eq.s32.totalorder %s14, 0
      %p159 = por %p157, %p158
      %p160 = scmp.ne.s32.totalorder %s149, %s152
      %p161 = scmp.eq.s32.totalorder %s19, 1
      %p162 = por %p160, %p161
      %p163 = scmp.ne.s32.totalorder %s152, %s153
      %p164 = scmp.eq.s32.totalorder %s19, 0
      %p165 = por %p163, %p164
      %p166 = scmp.ne.s32.totalorder %s152, %s153
      %p167 = scmp.eq.s32.totalorder %s20, 1
      %p168 = por %p166, %p167
      %p170 = scmp.ne.s32.totalorder %s153, %s169
      %p171 = scmp.eq.s32.totalorder %s20, 0
      %p172 = por %p170, %p171
      %p173 = scmp.le.s32.totalorder 1, %s14
      %p174 = scmp.lt.s32.totalorder %s14, 3
      %p175 = pnand %p173, %p174
      %p176 = pneg %p175
      // Predicated region
      $region9: #{tpu_custom_call.1} parent=5 // pred_check
        _
      $region10: #{tpu_custom_call.1} parent=5 // pred_check_branch
        %178 = sbr.rel (%p175) target = $region12
      $region11: #{tpu_custom_call.1} parent=5 // pred_region
        %s179 = ssub.s32 %s14, 1
        // Predicated region
        $region13: #{tpu_custom_call.1} parent=11 // pred_check
          %p180 = pneg %p35
        $region14: #{tpu_custom_call.1} parent=11 // pred_check_branch
          %182 = sbr.rel (%p180) target = $region16
        $region15: #{tpu_custom_call.1} parent=11 // pred_region
          _
        $region16: #{tpu_custom_call.1} parent=11 // pred_fallthru
          _
      $region12: #{tpu_custom_call.1} parent=5 // pred_fallthru
        _
      %p183 = scmp.lt.s32.totalorder %s14, 2
      // Predicated region
      $region17: #{tpu_custom_call.1} parent=5 // pred_check
        %p184 = pneg %p183
      $region18: #{tpu_custom_call.1} parent=5 // pred_check_branch
        %186 = sbr.rel (%p184) target = $region20
      $region19: #{tpu_custom_call.1} parent=5 // pred_region
        // Predicated region
        $region21: #{tpu_custom_call.1} parent=19 // pred_check
          %p187 = pneg %p55
        $region22: #{tpu_custom_call.1} parent=19 // pred_check_branch
          %189 = sbr.rel (%p187) target = $region24
        $region23: #{tpu_custom_call.1} parent=19 // pred_region
          %s190 = smul.u32 2, %s14
          %p191 = scmp.lt.s32.totalorder %s190, 3
          %s192 = scalar_select %p191, %s190, 3
          %s193 = smul.addr %s192, 4
          %s194 = scalar_lea.vmem %s1, %s193
          %s195 = smul.u32 2, %s14
        $region24: #{tpu_custom_call.1} parent=19 // pred_fallthru
          _
        // Predicated region
        $region25: #{tpu_custom_call.1} parent=19 // pred_check
          %p196 = pneg %p81
        $region26: #{tpu_custom_call.1} parent=19 // pred_check_branch
          %198 = sbr.rel (%p196) target = $region28
        $region27: #{tpu_custom_call.1} parent=19 // pred_region
          %s199 = smul.u32 2, %s14
          %p200 = scmp.lt.s32.totalorder %s199, 3
          %s201 = scalar_select %p200, %s199, 3
          %s202 = smul.addr %s201, 8
          %s203 = scalar_lea.vmem %s2, %s202
          %s204 = smul.u32 2, %s14
        $region28: #{tpu_custom_call.1} parent=19 // pred_fallthru
          _
        // Predicated region
        $region29: #{tpu_custom_call.1} parent=19 // pred_check
          %p205 = pneg %p107
        $region30: #{tpu_custom_call.1} parent=19 // pred_check_branch
          %207 = sbr.rel (%p205) target = $region32
        $region31: #{tpu_custom_call.1} parent=19 // pred_region
          %s208 = smul.u32 2, %s14
          %p209 = scmp.lt.s32.totalorder %s208, 3
          %s210 = scalar_select %p209, %s208, 3
          %s211 = smul.addr %s210, 8
          %s212 = scalar_lea.vmem %s3, %s211
          %s213 = smul.u32 2, %s14
        $region32: #{tpu_custom_call.1} parent=19 // pred_fallthru
          _
        // Predicated region
        $region33: #{tpu_custom_call.1} parent=19 // pred_check
          %p214 = pneg %p133
        $region34: #{tpu_custom_call.1} parent=19 // pred_check_branch
          %216 = sbr.rel (%p214) target = $region36
        $region35: #{tpu_custom_call.1} parent=19 // pred_region
          %s217 = smul.u32 2, %s14
          %p218 = scmp.lt.s32.totalorder %s217, 3
          %s219 = scalar_select %p218, %s217, 3
          %s220 = smul.addr %s219, 8
          %s221 = scalar_lea.vmem %s4, %s220
          %s222 = smul.u32 2, %s14
        $region36: #{tpu_custom_call.1} parent=19 // pred_fallthru
          _
      $region20: #{tpu_custom_call.1} parent=5 // pred_fallthru
        _
      %p223 = scmp.le.s32.totalorder 1, %s14
      %p224 = scmp.lt.s32.totalorder %s14, 3
      %p225 = pnand %p223, %p224
      %p226 = pneg %p225
      // Predicated region
      $region37: #{tpu_custom_call.1} parent=5 // pred_check
        _
      $region38: #{tpu_custom_call.1} parent=5 // pred_check_branch
        %228 = sbr.rel (%p225) target = $region40
      $region39: #{tpu_custom_call.1} parent=5 // pred_region
        %s229 = ssub.s32 %s14, 1
        %p230 = pneg %p35
        %p231 = pneg %p32
        %s232 = smul.u32 2, %s19
        %p233 = scmp.lt.s32.totalorder %s232, 3
        %s234 = scalar_select %p233, %s232, 3
        %s235 = smul.addr %s234, 4
        %s236 = scalar_lea.vmem %s1, %s235
        %p237 = pneg %p61
        %p238 = pneg %p58
        %s239 = smul.u32 2, %s19
        %p240 = scmp.lt.s32.totalorder %s239, 3
        %s241 = scalar_select %p240, %s239, 3
        %s242 = smul.addr %s241, 8
        %s243 = scalar_lea.vmem %s2, %s242
        %p244 = pneg %p87
        %p245 = pneg %p84
        %s246 = smul.u32 2, %s19
        %p247 = scmp.lt.s32.totalorder %s246, 3
        %s248 = scalar_select %p247, %s246, 3
        %s249 = smul.addr %s248, 8
        %s250 = scalar_lea.vmem %s3, %s249
        %p251 = pneg %p113
        %p252 = pneg %p110
        %s253 = smul.u32 2, %s19
        %p254 = scmp.lt.s32.totalorder %s253, 3
        %s255 = scalar_select %p254, %s253, 3
        %s256 = smul.addr %s255, 8
        %s257 = scalar_lea.vmem %s4, %s256
        %p258 = pneg %p139
        %p259 = pneg %p136
        %p260 = pneg %p165
        %p261 = pneg %p162
        %s262 = sand.u32 %s152, 1
        %s263 = scalar_lea.sflag [#allocation3], %s262
        %s264 = sand.u32 %s152, 1
        %s265 = smul.addr %s264, 64
        %s266 = scalar_lea.vmem [#allocation2], %s265
        %s267 = smul.u32 2, %s19
        %p268 = scmp.lt.s32.totalorder %s267, 3
        %s269 = scalar_select %p268, %s267, 3
        %s270 = smul.addr %s269, 4
        %s271 = scalar_lea.vmem %s1, %s270
        %s272 = smul.u32 2, %s19
        %s273 = smul.u32 2, %s19
        %p274 = scmp.lt.s32.totalorder %s273, 3
        %s275 = scalar_select %p274, %s273, 3
        %s276 = smul.addr %s275, 8
        %s277 = scalar_lea.vmem %s2, %s276
        %s278 = smul.u32 2, %s19
        %s279 = smul.u32 2, %s19
        %p280 = scmp.lt.s32.totalorder %s279, 3
        %s281 = scalar_select %p280, %s279, 3
        %s282 = smul.addr %s281, 8
        %s283 = scalar_lea.vmem %s3, %s282
        %s284 = smul.u32 2, %s19
        %s285 = smul.u32 2, %s19
        %p286 = scmp.lt.s32.totalorder %s285, 3
        %s287 = scalar_select %p286, %s285, 3
        %s288 = smul.addr %s287, 8
        %s289 = scalar_lea.vmem %s4, %s288
        %s290 = smul.u32 2, %s19
        %s291 = smul.u32 2, %s19
        %v293 = vld [vmem:[%s271] sm:$0xf]
        %v294 = vld [vmem:[%s271 + $0x4] sm:$0xf]
        %v295 = vld [vmem:[%s0] sm:$0xff]
        %v296 = vld [vmem:[%s0 + $0x8] sm:$0xff]
        %v297 = vld [vmem:[%s0 + $0x10] sm:$0xff]
        %v298 = vld [vmem:[%s0 + $0x18] sm:$0xff]
        %v299 = vld [vmem:[%s277] sm:$0xff]
        %v300 = vld [vmem:[%s277 + $0x8] sm:$0xff]
        %302 = vset.pattern.permute.xlu0 0
        %303 = vperm.xlu0 %302, %v299
        %v304 = vpop.permute.xlu0 %303
        %307 = vset.pattern.permute.xlu0 0
        %308 = vperm.xlu0 %307, %v300
        %v309 = vpop.permute.xlu0 %308
        %v313 = vunpack.c.l.b16 %v293
        %v314 = vunpack.c.l.b16 %v294
        %v315 = vpack.c.b16 %v314, %v313
        %v320 = vunpack.c.l.b16 %v295
        %v321 = vunpack.c.h.b16 %v295
        %v322 = vunpack.c.l.b16 %v296
        %v323 = vunpack.c.h.b16 %v296
        %v324 = vunpack.c.l.b16 %v297
        %v325 = vunpack.c.h.b16 %v297
        %v326 = vunpack.c.l.b16 %v298
        %v327 = vunpack.c.h.b16 %v298
        %v328 = vpack.c.b16 %v324, %v320
        %v329 = vpack.c.b16 %v325, %v321
        %v330 = vpack.c.b16 %v326, %v322
        %v331 = vpack.c.b16 %v327, %v323
        %vm336 = vcmask 130048
        %v338 = vsel %vm336, %v315, 0
        %340 = vmatprep.subr.bf16.mxu0 %v329
        %341 = vmatpush1.bf16.msra.mxu0 %v328
        %342 = vmatprep.subr.bf16.mxu0 0
        %343 = vmatpush1.bf16.msra.mxu0 0
        %344 = vmatprep.subr.bf16.mxu0 0
        %345 = vmatpush1.bf16.msra.mxu0 0
        %346 = vmatprep.subr.bf16.mxu0 0
        %347 = vmatpush1.bf16.msra.mxu0 0
        %348 = vmatprep.subr.bf16.mxu0 0
        %349 = vmatpush1.bf16.msra.mxu0 0
        %350 = vmatprep.subr.bf16.mxu0 0
        %351 = vmatpush1.bf16.msra.mxu0 0
        %352 = vmatprep.subr.bf16.mxu0 0
        %353 = vmatpush1.bf16.msra.mxu0 0
        %354 = vmatprep.subr.bf16.mxu0 0
        %355 = vmatpush1.bf16.msra.mxu0 0
        %356 = vmatprep.subr.bf16.mxu0 0
        %357 = vmatpush1.bf16.msra.mxu0 0
        %358 = vmatprep.subr.bf16.mxu0 0
        %359 = vmatpush1.bf16.msra.mxu0 0
        %360 = vmatprep.subr.bf16.mxu0 0
        %361 = vmatpush1.bf16.msra.mxu0 0
        %362 = vmatprep.subr.bf16.mxu0 0
        %363 = vmatpush1.bf16.msra.mxu0 0
        %364 = vmatprep.subr.bf16.mxu0 0
        %365 = vmatpush1.bf16.msra.mxu0 0
        %366 = vmatprep.subr.bf16.mxu0 0
        %367 = vmatpush1.bf16.msra.mxu0 0
        %368 = vmatprep.subr.bf16.mxu0 0
        %369 = vmatpush1.bf16.msra.mxu0 0
        %370 = vmatprep.subr.bf16.mxu0 0
        %371 = vmatpush1.bf16.msra.mxu0 0
        %372 = vmatprep.mubr.bf16.mxu0 0
        %373 = vmatmul.mubr.bf16.gmra.mrb[0].mxu0 %v338
        %v374 = vpop.f32.mrb[0].mxu0
        %v375 = vadd.f32 %v304, %v374
        %v376 = vpop.f32.mrb[0].mxu0
        %v377 = vadd.f32 %v304, %v376
        %v378 = vpop.f32.mrb[0].mxu0
        %v379 = vadd.f32 %v309, %v378
        %v380 = vpop.f32.mrb[0].mxu0
        %v381 = vadd.f32 %v309, %v380
        %382 = vdwg.mxu0
        %383 = vmatprep.subr.bf16.mxu0 %v331
        %384 = vmatpush1.bf16.msra.mxu0 %v330
        %385 = vmatprep.subr.bf16.mxu0 0
        %386 = vmatpush1.bf16.msra.mxu0 0
        %387 = vmatprep.subr.bf16.mxu0 0
        %388 = vmatpush1.bf16.msra.mxu0 0
        %389 = vmatprep.subr.bf16.mxu0 0
        %390 = vmatpush1.bf16.msra.mxu0 0
        %391 = vmatprep.subr.bf16.mxu0 0
        %392 = vmatpush1.bf16.msra.mxu0 0
        %393 = vmatprep.subr.bf16.mxu0 0
        %394 = vmatpush1.bf16.msra.mxu0 0
        %395 = vmatprep.subr.bf16.mxu0 0
        %396 = vmatpush1.bf16.msra.mxu0 0
        %397 = vmatprep.subr.bf16.mxu0 0
        %398 = vmatpush1.bf16.msra.mxu0 0
        %399 = vmatprep.subr.bf16.mxu0 0
        %400 = vmatpush1.bf16.msra.mxu0 0
        %401 = vmatprep.subr.bf16.mxu0 0
        %402 = vmatpush1.bf16.msra.mxu0 0
        %403 = vmatprep.subr.bf16.mxu0 0
        %404 = vmatpush1.bf16.msra.mxu0 0
        %405 = vmatprep.subr.bf16.mxu0 0
        %406 = vmatpush1.bf16.msra.mxu0 0
        %407 = vmatprep.subr.bf16.mxu0 0
        %408 = vmatpush1.bf16.msra.mxu0 0
        %409 = vmatprep.subr.bf16.mxu0 0
        %410 = vmatpush1.bf16.msra.mxu0 0
        %411 = vmatprep.subr.bf16.mxu0 0
        %412 = vmatpush1.bf16.msra.mxu0 0
        %413 = vmatprep.subr.bf16.mxu0 0
        %414 = vmatpush1.bf16.msra.mxu0 0
        %415 = vmatprep.mubr.bf16.mxu0 0
        %416 = vmatmul.mubr.bf16.gmra.mrb[0].mxu0 %v338
        %v417 = vpop.f32.mrb[0].mxu0
        %v418 = vadd.f32 %v304, %v417
        %v419 = vpop.f32.mrb[0].mxu0
        %v420 = vadd.f32 %v304, %v419
        %v421 = vpop.f32.mrb[0].mxu0
        %v422 = vadd.f32 %v309, %v421
        %v423 = vpop.f32.mrb[0].mxu0
        %v424 = vadd.f32 %v309, %v423
        %425 = vdwg.mxu0
        %v426 = vmax.f32 %v375, 0.0
        %v427 = vmax.f32 %v377, 0.0
        %v428 = vmax.f32 %v418, 0.0
        %v429 = vmax.f32 %v420, 0.0
        %v430 = vmax.f32 %v379, 0.0
        %v431 = vmax.f32 %v381, 0.0
        %v432 = vmax.f32 %v422, 0.0
        %v433 = vmax.f32 %v424, 0.0
        %v434 = vadd.f32 %v426, %v427
        %v435 = vadd.f32 %v434, %v428
        %v436 = vadd.f32 %v435, %v429
        %437 = vadd.xlane.f32.xlu0 %v436
        %v438 = vpop.xlane.xlu0 %437
        %v439 = vadd.f32 %v430, %v431
        %v440 = vadd.f32 %v439, %v432
        %v441 = vadd.f32 %v440, %v433
        %442 = vadd.xlane.f32.xlu0 %v441
        %v443 = vpop.xlane.xlu0 %442
        %v444 = vmul.f32 %v438, 0.001953125
        %v445 = vmul.f32 %v443, 0.001953125
        %v446 = vmul.f32 %v426, %v426
        %v447 = vmul.f32 %v427, %v427
        %v448 = vmul.f32 %v428, %v428
        %v449 = vmul.f32 %v429, %v429
        %v450 = vmul.f32 %v430, %v430
        %v451 = vmul.f32 %v431, %v431
        %v452 = vmul.f32 %v432, %v432
        %v453 = vmul.f32 %v433, %v433
        %v454 = vadd.f32 %v446, %v447
        %v455 = vadd.f32 %v454, %v448
        %v456 = vadd.f32 %v455, %v449
        %457 = vadd.xlane.f32.xlu0 %v456
        %v458 = vpop.xlane.xlu0 %457
        %v459 = vadd.f32 %v450, %v451
        %v460 = vadd.f32 %v459, %v452
        %v461 = vadd.f32 %v460, %v453
        %462 = vadd.xlane.f32.xlu0 %v461
        %v463 = vpop.xlane.xlu0 %462
        %v464 = vmul.f32 %v458, 0.001953125
        %v465 = vmul.f32 %v463, 0.001953125
        %v466 = vmul.f32 %v444, %v444
        %v467 = vmul.f32 %v445, %v445
        %v468 = vsub.f32 %v464, %v466
        %v469 = vsub.f32 %v465, %v467
        %v470 = vmax.f32 %v468, 0.0
        %v471 = vmax.f32 %v469, 0.0
        %v472 = vld [vmem:[%s283] sm:$0xff]
        %v473 = vld [vmem:[%s283 + $0x8] sm:$0xff]
        %v474 = vadd.f32 %v470, 1e-05
        %v475 = vadd.f32 %v471, 1e-05
        %v476 = vrsqrt.pop %v474
        %v477 = vrsqrt.pop %v475
        %v478 = vmul.f32 %v472, %v476
        %v479 = vmul.f32 %v473, %v477
        %v480 = vld [vmem:[%s289] sm:$0xff]
        %v481 = vld [vmem:[%s289 + $0x8] sm:$0xff]
        %v482 = vmul.f32 %v444, %v478
        %v483 = vmul.f32 %v445, %v479
        %v484 = vsub.f32 %v480, %v482
        %v485 = vsub.f32 %v481, %v483
        %487 = vset.pattern.permute.xlu0 0
        %488 = vperm.xlu0 %487, %v478
        %v489 = vpop.permute.xlu0 %488
        %492 = vset.pattern.permute.xlu0 0
        %493 = vperm.xlu0 %492, %v479
        %v494 = vpop.permute.xlu0 %493
        %v496 = vmul.f32 %v426, %v489
        %v497 = vmul.f32 %v427, %v489
        %v498 = vmul.f32 %v428, %v489
        %v499 = vmul.f32 %v429, %v489
        %v500 = vmul.f32 %v430, %v494
        %v501 = vmul.f32 %v431, %v494
        %v502 = vmul.f32 %v432, %v494
        %v503 = vmul.f32 %v433, %v494
        %505 = vset.pattern.permute.xlu0 0
        %506 = vperm.xlu0 %505, %v484
        %v507 = vpop.permute.xlu0 %506
        %510 = vset.pattern.permute.xlu0 0
        %511 = vperm.xlu0 %510, %v485
        %v512 = vpop.permute.xlu0 %511
        %v514 = vadd.f32 %v496, %v507
        %v515 = vadd.f32 %v497, %v507
        %v516 = vadd.f32 %v498, %v507
        %v517 = vadd.f32 %v499, %v507
        %v518 = vadd.f32 %v500, %v512
        %v519 = vadd.f32 %v501, %v512
        %v520 = vadd.f32 %v502, %v512
        %v521 = vadd.f32 %v503, %v512
        %522 = vst [vmem:[%s266] sm:$0xff] %v514
        %523 = vst [vmem:[%s266 + $0x8] sm:$0xff] %v515
        %524 = vst [vmem:[%s266 + $0x10] sm:$0xff] %v516
        %525 = vst [vmem:[%s266 + $0x18] sm:$0xff] %v517
        %526 = vst [vmem:[%s266 + $0x20] sm:$0xff] %v518
        %527 = vst [vmem:[%s266 + $0x28] sm:$0xff] %v519
        %528 = vst [vmem:[%s266 + $0x30] sm:$0xff] %v520
        %529 = vst [vmem:[%s266 + $0x38] sm:$0xff] %v521
        %s530 = sand.u32 %s152, 1
        %s531 = scalar_lea.sflag [#allocation3], %s530
        %s532 = sand.u32 %s152, 1
        %s533 = smul.addr %s532, 64
        %s534 = scalar_lea.vmem [#allocation2], %s533
        // Predicated region
        $region41: #{tpu_custom_call.1} parent=39 // pred_check
          %p535 = pneg %p162
        $region42: #{tpu_custom_call.1} parent=39 // pred_check_branch
          %537 = sbr.rel (%p535) target = $region44
        $region43: #{tpu_custom_call.1} parent=39 // pred_region
          %s538 = smul.u32 2, %s19
          %s540 = ssub.s32 1024, 1024
          %541 = vsyncadd %s531, %s540
          %s542 = smul.addr %s538, 4
          %s543 = smul.addr %s542, 128
          %s544 = scalar_lea.hbm %s5, %s543
          %s545 = sshll.u32 %s534, 4
          %s546 = int_to_ptr.vmem [resolvable:$true] %s545
          %551 = dma.vmem_to_hbm [thread:$0]  %s546, 1024, %s544, %s531, 512, 512, 32
        $region44: #{tpu_custom_call.1} parent=39 // pred_fallthru
          _
      $region40: #{tpu_custom_call.1} parent=5 // pred_fallthru
        _
      %p552 = scmp.le.s32.totalorder 2, %s14
      // Predicated region
      $region45: #{tpu_custom_call.1} parent=5 // pred_check
        %p553 = pneg %p552
      $region46: #{tpu_custom_call.1} parent=5 // pred_check_branch
        %555 = sbr.rel (%p553) target = $region48
      $region47: #{tpu_custom_call.1} parent=5 // pred_region
        %s556 = ssub.s32 %s14, 2
        // Predicated region
        $region49: #{tpu_custom_call.1} parent=47 // pred_check
          %p557 = pneg %p168
        $region50: #{tpu_custom_call.1} parent=47 // pred_check_branch
          %559 = sbr.rel (%p557) target = $region52
        $region51: #{tpu_custom_call.1} parent=47 // pred_region
          %s560 = sand.u32 %s153, 1
          %s561 = scalar_lea.sflag [#allocation3], %s560
          %s562 = sand.u32 %s153, 1
          %s563 = smul.addr %s562, 64
          %s564 = scalar_lea.vmem [#allocation2], %s563
          %565 = dma.done %s561, 1024
        $region52: #{tpu_custom_call.1} parent=47 // pred_fallthru
          _
      $region48: #{tpu_custom_call.1} parent=5 // pred_fallthru
        _
    $region6: #{tpu_custom_call.1} parent=1 // loop_footer
      %s18 = sadd.s32 1, %s14
    $region7: #{tpu_custom_call.1} parent=1 // loop_footer_branch
      %13 = sbr.rel target = $region3
    $region8: #{tpu_custom_call.1} parent=1 // loop_exit
      _
    %566 = vsyncpa [#allocation3], 1
    %s567 = scalar_lea.sflag [#allocation3], 1
    %568 = vsyncpa %s567, 1

// kernel: tpu_custom_call.1
$region0: #{tpu_custom_call.1}
  #allocation0 [shape = 'u32[]', space=smem, size = 0x4, offset = 0x4, fixed_abs, tag = 'smem constant byte address 0x4 - core index']
  #allocation1 [shape = 'u32[144,128]{1,0:T(1,128)}', space=vmem, size = 0x12000, scoped, tag = 'internal scratch']
  %s0 = inlined_call_operand.vmem [shape: bf16[16,512], index: 0, kind: input, shape index: {}]
  %s1 = inlined_call_operand.vmem [shape: bf16[32,16], index: 1, kind: input, shape index: {}]
  %s2 = inlined_call_operand.vmem [shape: f32[32,1], index: 2, kind: input, shape index: {}]
  %s3 = inlined_call_operand.vmem [shape: f32[32,1], index: 3, kind: input, shape index: {}]
  %s4 = inlined_call_operand.vmem [shape: f32[32,1], index: 4, kind: input, shape index: {}]
  %s5 = inlined_call_operand.hbm [shape: f32[32,512], index: 5, kind: output, shape index: {}]
  %s6 = sld [smem:[#allocation0]]
  $region53: #{tpu_custom_call.1} parent=0
    _
  %s8 = ssub.s32 1, %s6
  %s9 = scalar_select 0, %s8, %s6
  $region1: #{tpu_custom_call.1} parent=0
    #allocation2 [shape = 'u8[65536]{0}', space=vmem, size = 0x10000, scoped, tag = 'output window, operand 0']
    #allocation3 [shape = 's32[2]{0}', space=sflag, size = 0x8, scoped, tag = 'scoped memory for tpu_custom_call.1']
    %10 = vsyncpa [#allocation3], 0
    %s11 = scalar_lea.sflag [#allocation3], 1
    %12 = vsyncpa %s11, 0
    loop: start=0, step=1, limit=4
    $region2: #{tpu_custom_call.1} parent=1 // loop_pre_header
      _
    $region3: #{tpu_custom_call.1} parent=1 // loop_header
      %s14 = sphi 0, %s18
      %p15 = scmp.ge.s32.totalorder %s14, 4
      %s22 = sphi 0, %s22
      %s24 = sphi 0, %s22
      %s25 = sphi 0, %s24
      %s39 = sphi 0, %s25
      %s45 = sphi 0, %s47
      %s48 = sphi 0, %s45
      %s49 = sphi 0, %s48
      %s65 = sphi 0, %s49
      %s71 = sphi 0, %s73
      %s74 = sphi 0, %s71
      %s75 = sphi 0, %s74
      %s91 = sphi 0, %s75
      %s97 = sphi 0, %s99
      %s100 = sphi 0, %s97
      %s101 = sphi 0, %s100
      %s117 = sphi 0, %s101
      %s123 = sphi 0, %s125
      %s126 = sphi 0, %s123
      %s127 = sphi 0, %s126
      %s143 = sphi 0, %s127
      %s149 = sphi 0, %s151
      %s152 = sphi 0, %s149
      %s153 = sphi 0, %s152
      %s169 = sphi 0, %s153
    $region4: #{tpu_custom_call.1} parent=1 // loop_header_branch
      %17 = sbr.rel (%p15) target = $region8
    $region5: #{tpu_custom_call.1} parent=1 // loop_body
      %s19 = ssub.s32 %s14, 1
      %s20 = ssub.s32 %s14, 2
      %s21 = sadd.s32 %s14, 1
      %s23 = sadd.s32 %s22, 1
      %p26 = scmp.eq.s32.totalorder %s14, 1
      %p27 = scmp.ne.s32.totalorder %s22, %s24
      %p28 = scmp.eq.s32.totalorder %s14, 0
      %p29 = por %p27, %p28
      %p30 = scmp.ne.s32.totalorder %s22, %s24
      %p31 = scmp.eq.s32.totalorder %s19, 1
      %p32 = por %p30, %p31
      %p33 = scmp.ne.s32.totalorder %s24, %s25
      %p34 = scmp.eq.s32.totalorder %s19, 0
      %p35 = por %p33, %p34
      %p36 = scmp.ne.s32.totalorder %s24, %s25
      %p37 = scmp.eq.s32.totalorder %s20, 1
      %p38 = por %p36, %p37
      %p40 = scmp.ne.s32.totalorder %s25, %s39
      %p41 = scmp.eq.s32.totalorder %s20, 0
      %p42 = por %p40, %p41
      %s43 = ssub.s32 %s14, %s21
      %p44 = scmp.eq.s32.totalorder %s43, 0
      %s46 = sadd.s32 %s45, 1
      %s47 = scalar_select %p44, %s45, %s46
      %p50 = pneg %p44
      %p51 = scmp.eq.s32.totalorder %s14, 1
      %p52 = por %p50, %p51
      %p53 = scmp.ne.s32.totalorder %s45, %s48
      %p54 = scmp.eq.s32.totalorder %s14, 0
      %p55 = por %p53, %p54
      %p56 = scmp.ne.s32.totalorder %s45, %s48
      %p57 = scmp.eq.s32.totalorder %s19, 1
      %p58 = por %p56, %p57
      %p59 = scmp.ne.s32.totalorder %s48, %s49
      %p60 = scmp.eq.s32.totalorder %s19, 0
      %p61 = por %p59, %p60
      %p62 = scmp.ne.s32.totalorder %s48, %s49
      %p63 = scmp.eq.s32.totalorder %s20, 1
      %p64 = por %p62, %p63
      %p66 = scmp.ne.s32.totalorder %s49, %s65
      %p67 = scmp.eq.s32.totalorder %s20, 0
      %p68 = por %p66, %p67
      %s69 = ssub.s32 %s14, %s21
      %p70 = scmp.eq.s32.totalorder %s69, 0
      %s72 = sadd.s32 %s71, 1
      %s73 = scalar_select %p70, %s71, %s72
      %p76 = pneg %p70
      %p77 = scmp.eq.s32.totalorder %s14, 1
      %p78 = por %p76, %p77
      %p79 = scmp.ne.s32.totalorder %s71, %s74
      %p80 = scmp.eq.s32.totalorder %s14, 0
      %p81 = por %p79, %p80
      %p82 = scmp.ne.s32.totalorder %s71, %s74
      %p83 = scmp.eq.s32.totalorder %s19, 1
      %p84 = por %p82, %p83
      %p85 = scmp.ne.s32.totalorder %s74, %s75
      %p86 = scmp.eq.s32.totalorder %s19, 0
      %p87 = por %p85, %p86
      %p88 = scmp.ne.s32.totalorder %s74, %s75
      %p89 = scmp.eq.s32.totalorder %s20, 1
      %p90 = por %p88, %p89
      %p92 = scmp.ne.s32.totalorder %s75, %s91
      %p93 = scmp.eq.s32.totalorder %s20, 0
      %p94 = por %p92, %p93
      %s95 = ssub.s32 %s14, %s21
      %p96 = scmp.eq.s32.totalorder %s95, 0
      %s98 = sadd.s32 %s97, 1
      %s99 = scalar_select %p96, %s97, %s98
      %p102 = pneg %p96
      %p103 = scmp.eq.s32.totalorder %s14, 1
      %p104 = por %p102, %p103
      %p105 = scmp.ne.s32.totalorder %s97, %s100
      %p106 = scmp.eq.s32.totalorder %s14, 0
      %p107 = por %p105, %p106
      %p108 = scmp.ne.s32.totalorder %s97, %s100
      %p109 = scmp.eq.s32.totalorder %s19, 1
      %p110 = por %p108, %p109
      %p111 = scmp.ne.s32.totalorder %s100, %s101
      %p112 = scmp.eq.s32.totalorder %s19, 0
      %p113 = por %p111, %p112
      %p114 = scmp.ne.s32.totalorder %s100, %s101
      %p115 = scmp.eq.s32.totalorder %s20, 1
      %p116 = por %p114, %p115
      %p118 = scmp.ne.s32.totalorder %s101, %s117
      %p119 = scmp.eq.s32.totalorder %s20, 0
      %p120 = por %p118, %p119
      %s121 = ssub.s32 %s14, %s21
      %p122 = scmp.eq.s32.totalorder %s121, 0
      %s124 = sadd.s32 %s123, 1
      %s125 = scalar_select %p122, %s123, %s124
      %p128 = pneg %p122
      %p129 = scmp.eq.s32.totalorder %s14, 1
      %p130 = por %p128, %p129
      %p131 = scmp.ne.s32.totalorder %s123, %s126
      %p132 = scmp.eq.s32.totalorder %s14, 0
      %p133 = por %p131, %p132
      %p134 = scmp.ne.s32.totalorder %s123, %s126
      %p135 = scmp.eq.s32.totalorder %s19, 1
      %p136 = por %p134, %p135
      %p137 = scmp.ne.s32.totalorder %s126, %s127
      %p138 = scmp.eq.s32.totalorder %s19, 0
      %p139 = por %p137, %p138
      %p140 = scmp.ne.s32.totalorder %s126, %s127
      %p141 = scmp.eq.s32.totalorder %s20, 1
      %p142 = por %p140, %p141
      %p144 = scmp.ne.s32.totalorder %s127, %s143
      %p145 = scmp.eq.s32.totalorder %s20, 0
      %p146 = por %p144, %p145
      %s147 = ssub.s32 %s14, %s21
      %p148 = scmp.eq.s32.totalorder %s147, 0
      %s150 = sadd.s32 %s149, 1
      %s151 = scalar_select %p148, %s149, %s150
      %p154 = pneg %p148
      %p155 = scmp.eq.s32.totalorder %s14, 1
      %p156 = por %p154, %p155
      %p157 = scmp.ne.s32.totalorder %s149, %s152
      %p158 = scmp.eq.s32.totalorder %s14, 0
      %p159 = por %p157, %p158
      %p160 = scmp.ne.s32.totalorder %s149, %s152
      %p161 = scmp.eq.s32.totalorder %s19, 1
      %p162 = por %p160, %p161
      %p163 = scmp.ne.s32.totalorder %s152, %s153
      %p164 = scmp.eq.s32.totalorder %s19, 0
      %p165 = por %p163, %p164
      %p166 = scmp.ne.s32.totalorder %s152, %s153
      %p167 = scmp.eq.s32.totalorder %s20, 1
      %p168 = por %p166, %p167
      %p170 = scmp.ne.s32.totalorder %s153, %s169
      %p171 = scmp.eq.s32.totalorder %s20, 0
      %p172 = por %p170, %p171
      %p173 = scmp.le.s32.totalorder 1, %s14
      %p174 = scmp.lt.s32.totalorder %s14, 3
      %p175 = pnand %p173, %p174
      %p176 = pneg %p175
      // Predicated region
      $region9: #{tpu_custom_call.1} parent=5 // pred_check
        _
      $region10: #{tpu_custom_call.1} parent=5 // pred_check_branch
        %178 = sbr.rel (%p175) target = $region12
      $region11: #{tpu_custom_call.1} parent=5 // pred_region
        %s179 = ssub.s32 %s14, 1
        // Predicated region
        $region13: #{tpu_custom_call.1} parent=11 // pred_check
          %p180 = pneg %p35
        $region14: #{tpu_custom_call.1} parent=11 // pred_check_branch
          %182 = sbr.rel (%p180) target = $region16
        $region15: #{tpu_custom_call.1} parent=11 // pred_region
          _
        $region16: #{tpu_custom_call.1} parent=11 // pred_fallthru
          _
      $region12: #{tpu_custom_call.1} parent=5 // pred_fallthru
        _
      %p183 = scmp.lt.s32.totalorder %s14, 2
      // Predicated region
      $region17: #{tpu_custom_call.1} parent=5 // pred_check
        %p184 = pneg %p183
      $region18: #{tpu_custom_call.1} parent=5 // pred_check_branch
        %186 = sbr.rel (%p184) target = $region20
      $region19: #{tpu_custom_call.1} parent=5 // pred_region
        // Predicated region
        $region21: #{tpu_custom_call.1} parent=19 // pred_check
          %p187 = pneg %p55
        $region22: #{tpu_custom_call.1} parent=19 // pred_check_branch
          %189 = sbr.rel (%p187) target = $region24
        $region23: #{tpu_custom_call.1} parent=19 // pred_region
          %s190 = smul.u32 2, %s14
          %p191 = scmp.lt.s32.totalorder %s190, 3
          %s192 = scalar_select %p191, %s190, 3
          %s193 = smul.addr %s192, 4
          %s194 = scalar_lea.vmem %s1, %s193
          %s195 = smul.u32 2, %s14
        $region24: #{tpu_custom_call.1} parent=19 // pred_fallthru
          _
        // Predicated region
        $region25: #{tpu_custom_call.1} parent=19 // pred_check
          %p196 = pneg %p81
        $region26: #{tpu_custom_call.1} parent=19 // pred_check_branch
          %198 = sbr.rel (%p196) target = $region28
        $region27: #{tpu_custom_call.1} parent=19 // pred_region
          %s199 = smul.u32 2, %s14
          %p200 = scmp.lt.s32.totalorder %s199, 3
          %s201 = scalar_select %p200, %s199, 3
          %s202 = smul.addr %s201, 8
          %s203 = scalar_lea.vmem %s2, %s202
          %s204 = smul.u32 2, %s14
        $region28: #{tpu_custom_call.1} parent=19 // pred_fallthru
          _
        // Predicated region
        $region29: #{tpu_custom_call.1} parent=19 // pred_check
          %p205 = pneg %p107
        $region30: #{tpu_custom_call.1} parent=19 // pred_check_branch
          %207 = sbr.rel (%p205) target = $region32
        $region31: #{tpu_custom_call.1} parent=19 // pred_region
          %s208 = smul.u32 2, %s14
          %p209 = scmp.lt.s32.totalorder %s208, 3
          %s210 = scalar_select %p209, %s208, 3
          %s211 = smul.addr %s210, 8
          %s212 = scalar_lea.vmem %s3, %s211
          %s213 = smul.u32 2, %s14
        $region32: #{tpu_custom_call.1} parent=19 // pred_fallthru
          _
        // Predicated region
        $region33: #{tpu_custom_call.1} parent=19 // pred_check
          %p214 = pneg %p133
        $region34: #{tpu_custom_call.1} parent=19 // pred_check_branch
          %216 = sbr.rel (%p214) target = $region36
        $region35: #{tpu_custom_call.1} parent=19 // pred_region
          %s217 = smul.u32 2, %s14
          %p218 = scmp.lt.s32.totalorder %s217, 3
          %s219 = scalar_select %p218, %s217, 3
          %s220 = smul.addr %s219, 8
          %s221 = scalar_lea.vmem %s4, %s220
          %s222 = smul.u32 2, %s14
        $region36: #{tpu_custom_call.1} parent=19 // pred_fallthru
          _
      $region20: #{tpu_custom_call.1} parent=5 // pred_fallthru
        _
      %p223 = scmp.le.s32.totalorder 1, %s14
      %p224 = scmp.lt.s32.totalorder %s14, 3
      %p225 = pnand %p223, %p224
      %p226 = pneg %p225
      // Predicated region
      $region37: #{tpu_custom_call.1} parent=5 // pred_check
        _
      $region38: #{tpu_custom_call.1} parent=5 // pred_check_branch
        %228 = sbr.rel (%p225) target = $region40
      $region39: #{tpu_custom_call.1} parent=5 // pred_region
        %s229 = ssub.s32 %s14, 1
        %p230 = pneg %p35
        %p231 = pneg %p32
        %s232 = smul.u32 2, %s19
        %p233 = scmp.lt.s32.totalorder %s232, 3
        %s234 = scalar_select %p233, %s232, 3
        %s235 = smul.addr %s234, 4
        %s236 = scalar_lea.vmem %s1, %s235
        %p237 = pneg %p61
        %p238 = pneg %p58
        %s239 = smul.u32 2, %s19
        %p240 = scmp.lt.s32.totalorder %s239, 3
        %s241 = scalar_select %p240, %s239, 3
        %s242 = smul.addr %s241, 8
        %s243 = scalar_lea.vmem %s2, %s242
        %p244 = pneg %p87
        %p245 = pneg %p84
        %s246 = smul.u32 2, %s19
        %p247 = scmp.lt.s32.totalorder %s246, 3
        %s248 = scalar_select %p247, %s246, 3
        %s249 = smul.addr %s248, 8
        %s250 = scalar_lea.vmem %s3, %s249
        %p251 = pneg %p113
        %p252 = pneg %p110
        %s253 = smul.u32 2, %s19
        %p254 = scmp.lt.s32.totalorder %s253, 3
        %s255 = scalar_select %p254, %s253, 3
        %s256 = smul.addr %s255, 8
        %s257 = scalar_lea.vmem %s4, %s256
        %p258 = pneg %p139
        %p259 = pneg %p136
        %p260 = pneg %p165
        %p261 = pneg %p162
        %s262 = sand.u32 %s152, 1
        %s263 = scalar_lea.sflag [#allocation3], %s262
        %s264 = sand.u32 %s152, 1
        %s265 = smul.addr %s264, 64
        %s266 = scalar_lea.vmem [#allocation2], %s265
        %s267 = smul.u32 2, %s19
        %p268 = scmp.lt.s32.totalorder %s267, 3
        %s269 = scalar_select %p268, %s267, 3
        %s270 = smul.addr %s269, 4
        %s271 = scalar_lea.vmem %s1, %s270
        %s272 = smul.u32 2, %s19
        %s273 = smul.u32 2, %s19
        %p274 = scmp.lt.s32.totalorder %s273, 3
        %s275 = scalar_select %p274, %s273, 3
        %s276 = smul.addr %s275, 8
        %s277 = scalar_lea.vmem %s2, %s276
        %s278 = smul.u32 2, %s19
        %s279 = smul.u32 2, %s19
        %p280 = scmp.lt.s32.totalorder %s279, 3
        %s281 = scalar_select %p280, %s279, 3
        %s282 = smul.addr %s281, 8
        %s283 = scalar_lea.vmem %s3, %s282
        %s284 = smul.u32 2, %s19
        %s285 = smul.u32 2, %s19
        %p286 = scmp.lt.s32.totalorder %s285, 3
        %s287 = scalar_select %p286, %s285, 3
        %s288 = smul.addr %s287, 8
        %s289 = scalar_lea.vmem %s4, %s288
        %s290 = smul.u32 2, %s19
        %s291 = smul.u32 2, %s19
        %v293 = vld [vmem:[%s271] sm:$0xf]
        %v294 = vld [vmem:[%s271 + $0x4] sm:$0xf]
        %v295 = vld [vmem:[%s0] sm:$0xff]
        %v296 = vld [vmem:[%s0 + $0x8] sm:$0xff]
        %v297 = vld [vmem:[%s0 + $0x10] sm:$0xff]
        %v298 = vld [vmem:[%s0 + $0x18] sm:$0xff]
        %v299 = vld [vmem:[%s277] sm:$0xff]
        %v300 = vld [vmem:[%s277 + $0x8] sm:$0xff]
        %302 = vset.pattern.permute.xlu0 0
        %303 = vperm.xlu0 %302, %v299
        %v304 = vpop.permute.xlu0 %303
        %307 = vset.pattern.permute.xlu0 0
        %308 = vperm.xlu0 %307, %v300
        %v309 = vpop.permute.xlu0 %308
        %v313 = vunpack.c.l.b16 %v293
        %v314 = vunpack.c.l.b16 %v294
        %v315 = vpack.c.b16 %v314, %v313
        %v320 = vunpack.c.l.b16 %v295
        %v321 = vunpack.c.h.b16 %v295
        %v322 = vunpack.c.l.b16 %v296
        %v323 = vunpack.c.h.b16 %v296
        %v324 = vunpack.c.l.b16 %v297
        %v325 = vunpack.c.h.b16 %v297
        %v326 = vunpack.c.l.b16 %v298
        %v327 = vunpack.c.h.b16 %v298
        %v328 = vpack.c.b16 %v324, %v320
        %v329 = vpack.c.b16 %v325, %v321
        %v330 = vpack.c.b16 %v326, %v322
        %v331 = vpack.c.b16 %v327, %v323
        %vm336 = vcmask 130048
        %v338 = vsel %vm336, %v315, 0
        %340 = vmatprep.subr.bf16.mxu0 %v329
        %341 = vmatpush1.bf16.msra.mxu0 %v328
        %342 = vmatprep.subr.bf16.mxu0 0
        %343 = vmatpush1.bf16.msra.mxu0 0
        %344 = vmatprep.subr.bf16.mxu0 0
        %345 = vmatpush1.bf16.msra.mxu0 0
        %346 = vmatprep.subr.bf16.mxu0 0
        %347 = vmatpush1.bf16.msra.mxu0 0
        %348 = vmatprep.subr.bf16.mxu0 0
        %349 = vmatpush1.bf16.msra.mxu0 0
        %350 = vmatprep.subr.bf16.mxu0 0
        %351 = vmatpush1.bf16.msra.mxu0 0
        %352 = vmatprep.subr.bf16.mxu0 0
        %353 = vmatpush1.bf16.msra.mxu0 0
        %354 = vmatprep.subr.bf16.mxu0 0
        %355 = vmatpush1.bf16.msra.mxu0 0
        %356 = vmatprep.subr.bf16.mxu0 0
        %357 = vmatpush1.bf16.msra.mxu0 0
        %358 = vmatprep.subr.bf16.mxu0 0
        %359 = vmatpush1.bf16.msra.mxu0 0
        %360 = vmatprep.subr.bf16.mxu0 0
        %361 = vmatpush1.bf16.msra.mxu0 0
        %362 = vmatprep.subr.bf16.mxu0 0
        %363 = vmatpush1.bf16.msra.mxu0 0
        %364 = vmatprep.subr.bf16.mxu0 0
        %365 = vmatpush1.bf16.msra.mxu0 0
        %366 = vmatprep.subr.bf16.mxu0 0
        %367 = vmatpush1.bf16.msra.mxu0 0
        %368 = vmatprep.subr.bf16.mxu0 0
        %369 = vmatpush1.bf16.msra.mxu0 0
        %370 = vmatprep.subr.bf16.mxu0 0
        %371 = vmatpush1.bf16.msra.mxu0 0
        %372 = vmatprep.mubr.bf16.mxu0 0
        %373 = vmatmul.mubr.bf16.gmra.mrb[0].mxu0 %v338
        %v374 = vpop.f32.mrb[0].mxu0
        %v375 = vadd.f32 %v304, %v374
        %v376 = vpop.f32.mrb[0].mxu0
        %v377 = vadd.f32 %v304, %v376
        %v378 = vpop.f32.mrb[0].mxu0
        %v379 = vadd.f32 %v309, %v378
        %v380 = vpop.f32.mrb[0].mxu0
        %v381 = vadd.f32 %v309, %v380
        %382 = vdwg.mxu0
        %383 = vmatprep.subr.bf16.mxu0 %v331
        %384 = vmatpush1.bf16.msra.mxu0 %v330
        %385 = vmatprep.subr.bf16.mxu0 0
        %386 = vmatpush1.bf16.msra.mxu0 0
        %387 = vmatprep.subr.bf16.mxu0 0
        %388 = vmatpush1.bf16.msra.mxu0 0
        %389 = vmatprep.subr.bf16.mxu0 0
        %390 = vmatpush1.bf16.msra.mxu0 0
        %391 = vmatprep.subr.bf16.mxu0 0
        %392 = vmatpush1.bf16.msra.mxu0 0
        %393 = vmatprep.subr.bf16.mxu0 0
        %394 = vmatpush1.bf16.msra.mxu0 0
        %395 = vmatprep.subr.bf16.mxu0 0
        %396 = vmatpush1.bf16.msra.mxu0 0
        %397 = vmatprep.subr.bf16.mxu0 0
        %398 = vmatpush1.bf16.msra.mxu0 0
        %399 = vmatprep.subr.bf16.mxu0 0
        %400 = vmatpush1.bf16.msra.mxu0 0
        %401 = vmatprep.subr.bf16.mxu0 0
        %402 = vmatpush1.bf16.msra.mxu0 0
        %403 = vmatprep.subr.bf16.mxu0 0
        %404 = vmatpush1.bf16.msra.mxu0 0
        %405 = vmatprep.subr.bf16.mxu0 0
        %406 = vmatpush1.bf16.msra.mxu0 0
        %407 = vmatprep.subr.bf16.mxu0 0
        %408 = vmatpush1.bf16.msra.mxu0 0
        %409 = vmatprep.subr.bf16.mxu0 0
        %410 = vmatpush1.bf16.msra.mxu0 0
        %411 = vmatprep.subr.bf16.mxu0 0
        %412 = vmatpush1.bf16.msra.mxu0 0
        %413 = vmatprep.subr.bf16.mxu0 0
        %414 = vmatpush1.bf16.msra.mxu0 0
        %415 = vmatprep.mubr.bf16.mxu0 0
        %416 = vmatmul.mubr.bf16.gmra.mrb[0].mxu0 %v338
        %v417 = vpop.f32.mrb[0].mxu0
        %v418 = vadd.f32 %v304, %v417
        %v419 = vpop.f32.mrb[0].mxu0
        %v420 = vadd.f32 %v304, %v419
        %v421 = vpop.f32.mrb[0].mxu0
        %v422 = vadd.f32 %v309, %v421
        %v423 = vpop.f32.mrb[0].mxu0
        %v424 = vadd.f32 %v309, %v423
        %425 = vdwg.mxu0
        %v426 = vmax.f32 %v375, 0.0
        %v427 = vmax.f32 %v377, 0.0
        %v428 = vmax.f32 %v418, 0.0
        %v429 = vmax.f32 %v420, 0.0
        %v430 = vmax.f32 %v379, 0.0
        %v431 = vmax.f32 %v381, 0.0
        %v432 = vmax.f32 %v422, 0.0
        %v433 = vmax.f32 %v424, 0.0
        %v434 = vadd.f32 %v426, %v427
        %v435 = vadd.f32 %v434, %v428
        %v436 = vadd.f32 %v435, %v429
        %437 = vadd.xlane.f32.xlu0 %v436
        %v438 = vpop.xlane.xlu0 %437
        %v439 = vadd.f32 %v430, %v431
        %v440 = vadd.f32 %v439, %v432
        %v441 = vadd.f32 %v440, %v433
        %442 = vadd.xlane.f32.xlu0 %v441
        %v443 = vpop.xlane.xlu0 %442
        %v444 = vmul.f32 %v438, 0.001953125
        %v445 = vmul.f32 %v443, 0.001953125
        %v446 = vmul.f32 %v426, %v426
        %v447 = vmul.f32 %v427, %v427
        %v448 = vmul.f32 %v428, %v428
        %v449 = vmul.f32 %v429, %v429
        %v450 = vmul.f32 %v430, %v430
        %v451 = vmul.f32 %v431, %v431
        %v452 = vmul.f32 %v432, %v432
        %v453 = vmul.f32 %v433, %v433
        %v454 = vadd.f32 %v446, %v447
        %v455 = vadd.f32 %v454, %v448
        %v456 = vadd.f32 %v455, %v449
        %457 = vadd.xlane.f32.xlu0 %v456
        %v458 = vpop.xlane.xlu0 %457
        %v459 = vadd.f32 %v450, %v451
        %v460 = vadd.f32 %v459, %v452
        %v461 = vadd.f32 %v460, %v453
        %462 = vadd.xlane.f32.xlu0 %v461
        %v463 = vpop.xlane.xlu0 %462
        %v464 = vmul.f32 %v458, 0.001953125
        %v465 = vmul.f32 %v463, 0.001953125
        %v466 = vmul.f32 %v444, %v444
        %v467 = vmul.f32 %v445, %v445
        %v468 = vsub.f32 %v464, %v466
        %v469 = vsub.f32 %v465, %v467
        %v470 = vmax.f32 %v468, 0.0
        %v471 = vmax.f32 %v469, 0.0
        %v472 = vld [vmem:[%s283] sm:$0xff]
        %v473 = vld [vmem:[%s283 + $0x8] sm:$0xff]
        %v474 = vadd.f32 %v470, 1e-05
        %v475 = vadd.f32 %v471, 1e-05
        %v476 = vrsqrt.pop %v474
        %v477 = vrsqrt.pop %v475
        %v478 = vmul.f32 %v472, %v476
        %v479 = vmul.f32 %v473, %v477
        %v480 = vld [vmem:[%s289] sm:$0xff]
        %v481 = vld [vmem:[%s289 + $0x8] sm:$0xff]
        %v482 = vmul.f32 %v444, %v478
        %v483 = vmul.f32 %v445, %v479
        %v484 = vsub.f32 %v480, %v482
        %v485 = vsub.f32 %v481, %v483
        %487 = vset.pattern.permute.xlu0 0
        %488 = vperm.xlu0 %487, %v478
        %v489 = vpop.permute.xlu0 %488
        %492 = vset.pattern.permute.xlu0 0
        %493 = vperm.xlu0 %492, %v479
        %v494 = vpop.permute.xlu0 %493
        %v496 = vmul.f32 %v426, %v489
        %v497 = vmul.f32 %v427, %v489
        %v498 = vmul.f32 %v428, %v489
        %v499 = vmul.f32 %v429, %v489
        %v500 = vmul.f32 %v430, %v494
        %v501 = vmul.f32 %v431, %v494
        %v502 = vmul.f32 %v432, %v494
        %v503 = vmul.f32 %v433, %v494
        %505 = vset.pattern.permute.xlu0 0
        %506 = vperm.xlu0 %505, %v484
        %v507 = vpop.permute.xlu0 %506
        %510 = vset.pattern.permute.xlu0 0
        %511 = vperm.xlu0 %510, %v485
        %v512 = vpop.permute.xlu0 %511
        %v514 = vadd.f32 %v496, %v507
        %v515 = vadd.f32 %v497, %v507
        %v516 = vadd.f32 %v498, %v507
        %v517 = vadd.f32 %v499, %v507
        %v518 = vadd.f32 %v500, %v512
        %v519 = vadd.f32 %v501, %v512
        %v520 = vadd.f32 %v502, %v512
        %v521 = vadd.f32 %v503, %v512
        %522 = vst [vmem:[%s266] sm:$0xff] %v514
        %523 = vst [vmem:[%s266 + $0x8] sm:$0xff] %v515
        %524 = vst [vmem:[%s266 + $0x10] sm:$0xff] %v516
        %525 = vst [vmem:[%s266 + $0x18] sm:$0xff] %v517
        %526 = vst [vmem:[%s266 + $0x20] sm:$0xff] %v518
        %527 = vst [vmem:[%s266 + $0x28] sm:$0xff] %v519
        %528 = vst [vmem:[%s266 + $0x30] sm:$0xff] %v520
        %529 = vst [vmem:[%s266 + $0x38] sm:$0xff] %v521
        %s530 = sand.u32 %s152, 1
        %s531 = scalar_lea.sflag [#allocation3], %s530
        %s532 = sand.u32 %s152, 1
        %s533 = smul.addr %s532, 64
        %s534 = scalar_lea.vmem [#allocation2], %s533
        // Predicated region
        $region41: #{tpu_custom_call.1} parent=39 // pred_check
          %p535 = pneg %p162
        $region42: #{tpu_custom_call.1} parent=39 // pred_check_branch
          %537 = sbr.rel (%p535) target = $region44
        $region43: #{tpu_custom_call.1} parent=39 // pred_region
          %s538 = smul.u32 2, %s19
          %s540 = ssub.s32 1024, 1024
          %541 = vsyncadd %s531, %s540
          %s542 = smul.addr %s538, 4
          %s543 = smul.addr %s542, 128
          %s544 = scalar_lea.hbm %s5, %s543
          %s545 = sshll.u32 %s534, 4
          %s546 = int_to_ptr.vmem [resolvable:$true] %s545
          %551 = dma.vmem_to_hbm [thread:$0]  %s546, 1024, %s544, %s531, 512, 512, 32
        $region44: #{tpu_custom_call.1} parent=39 // pred_fallthru
          _
      $region40: #{tpu_custom_call.1} parent=5 // pred_fallthru
        _
      %p552 = scmp.le.s32.totalorder 2, %s14
      // Predicated region
      $region45: #{tpu_custom_call.1} parent=5 // pred_check
        %p553 = pneg %p552
      $region46: #{tpu_custom_call.1} parent=5 // pred_check_branch
        %555 = sbr.rel (%p553) target = $region48
      $region47: #{tpu_custom_call.1} parent=5 // pred_region
        %s556 = ssub.s32 %s14, 2
        // Predicated region
        $region49: #{tpu_custom_call.1} parent=47 // pred_check
          %p557 = pneg %p168
        $region50: #{tpu_custom_call.1} parent=47 // pred_check_branch
          %559 = sbr.rel (%p557) target = $region52
        $region51: #{tpu_custom_call.1} parent=47 // pred_region
          %s560 = sand.u32 %s153, 1
          %s561 = scalar_lea.sflag [#allocation3], %s560
          %s562 = sand.u32 %s153, 1
          %s563 = smul.addr %s562, 64
          %s564 = scalar_lea.vmem [#allocation2], %s563
          %565 = dma.done %s561, 1024
        $region52: #{tpu_custom_call.1} parent=47 // pred_fallthru
          _
      $region48: #{tpu_custom_call.1} parent=5 // pred_fallthru
        _
    $region6: #{tpu_custom_call.1} parent=1 // loop_footer
      %s18 = sadd.s32 1, %s14
    $region7: #{tpu_custom_call.1} parent=1 // loop_footer_branch
      %13 = sbr.rel target = $region3
    $region8: #{tpu_custom_call.1} parent=1 // loop_exit
      _
    %566 = vsyncpa [#allocation3], 1
    %s567 = scalar_lea.sflag [#allocation3], 1
    %568 = vsyncpa %s567, 1

</llo_original>
